<compile_context>
chip_gen: v7x
topology: tpu7x:2x2x1
jax: 0.10.0
libtpu: 0.0.40
codegen_flags: <defaults>
</compile_context>

<pallas_src>
import functools

import jax
import jax.numpy as jnp
from jax.experimental import pallas as pl
from jax.experimental.pallas import tpu as pltpu


def _focal_cosine_kernel(logits_ref, target_ref, out_ref, acc_ref, *,
                         gamma, scale_focal, batch, need_mask):
    i = pl.program_id(0)

    @pl.when(i == 0)
    def _init():
        acc_ref[0] = jnp.float32(0.0)   # sum_i (1 - cos_i)
        acc_ref[1] = jnp.float32(0.0)   # sum_i (1 - pt_i)^gamma * ce_i

    x = logits_ref[...].astype(jnp.float32)          # (TB, C)
    t = target_ref[...]                              # (TB, 1) int32
    tb, c = x.shape

    # one masked gather, reused by both loss terms: g_i = x[i, t_i]
    col = jax.lax.broadcasted_iota(jnp.int32, (tb, c), 1)
    onehot = (col == t).astype(jnp.float32)
    g = jnp.sum(x * onehot, axis=-1, keepdims=True)              # (TB, 1)

    # --- cosine embedding loss (y = +1); ||onehot|| == 1 exactly -------------
    sq_norm = jnp.sum(x * x, axis=-1, keepdims=True)             # (TB, 1)
    inv_norm = jax.lax.rsqrt(jnp.maximum(sq_norm, jnp.float32(1e-24)))  # eps=1e-12 on the norm
    cos = g * inv_norm
    cos_rows = 1.0 - cos                                         # (TB, 1)

    # --- focal loss on cross entropy (reuse g for log p_t) -------------------
    m = jnp.max(x, axis=-1, keepdims=True)
    lse = jnp.log(jnp.sum(jnp.exp(x - m), axis=-1, keepdims=True))
    log_p_t = (g - m) - lse                                      # (TB, 1)
    ce = -log_p_t
    pt = jnp.exp(log_p_t)
    base = 1.0 - pt
    # gamma is a Python float -> specialize at trace time
    if gamma == 2.0:
        powed = base * base
    elif gamma == 1.0:
        powed = base
    elif gamma == 0.0:
        powed = jnp.ones_like(base)
    else:
        powed = jnp.where(
            base > 0.0,
            jnp.exp(jnp.float32(gamma) * jnp.log(jnp.maximum(base, 1e-30))),
            jnp.zeros_like(base))
    focal_rows = powed * ce                                      # alpha/xent folded in later

    if need_mask:  # last tile may read past B: mask padded rows out
        row = i * tb + jax.lax.broadcasted_iota(jnp.int32, (tb, 1), 0)
        valid = row < batch
        cos_rows = jnp.where(valid, cos_rows, 0.0)
        focal_rows = jnp.where(valid, focal_rows, 0.0)

    acc_ref[0] += jnp.sum(cos_rows)
    acc_ref[1] += jnp.sum(focal_rows)

    @pl.when(i == pl.num_programs(0) - 1)
    def _finalize():
        inv_b = jnp.float32(1.0 / batch)
        out_ref[0, 0] = (acc_ref[0] + jnp.float32(scale_focal) * acc_ref[1]) * inv_b


def focal_cosine_loss(logits, target, *, alpha=1.0, gamma=2.0, xent=0.1,
                      block_rows=None):
    """Pallas implementation of FocalCosineLoss (reduction='mean')."""
    # TODO(synk): only reduction='mean' (the module default) is implemented.
    # TODO(synk): for very large C (>8-16K) a C-tiled online-softmax variant
    #             would be needed; here the full class row stays in one block.
    B, C = logits.shape
    itemsize = jnp.dtype(logits.dtype).itemsize
    target2d = target.astype(jnp.int32).reshape(B, 1)

    if block_rows is None:
        # keep ~4 in-flight logits tiles (2 inputs x double buffering) <= ~24 MiB
        budget = 24 * 1024 * 1024
        bytes_per_row = max(1, C * itemsize)
        max_rows = max(8, budget // (4 * bytes_per_row))
        block_rows = min(B, 512, max_rows)
    if block_rows >= 8:
        block_rows = (block_rows // 8) * 8           # keep sublane alignment
    block_rows = max(1, min(block_rows, B))
    num_tiles = pl.cdiv(B, block_rows)
    need_mask = (B % block_rows) != 0

    kernel = functools.partial(
        _focal_cosine_kernel,
        gamma=float(gamma),
        scale_focal=float(xent) * float(alpha),
        batch=B,
        need_mask=need_mask,
    )

    cost = pl.CostEstimate(
        flops=8 * B * C,
        transcendentals=B * C + 4 * B,
        bytes_accessed=B * C * itemsize + B * 4 + 4,
    )

    out = pl.pallas_call(
        kernel,
        out_shape=jax.ShapeDtypeStruct((1, 1), jnp.float32),
        grid_spec=pltpu.PrefetchScalarGridSpec(
            num_scalar_prefetch=0,
            grid=(num_tiles,),
            in_specs=[
                pl.BlockSpec((block_rows, C), lambda i: (i, 0)),
                pl.BlockSpec((block_rows, 1), lambda i: (i, 0)),
            ],
            out_specs=pl.BlockSpec(memory_space=pltpu.MemorySpace.SMEM),
            scratch_shapes=[pltpu.SMEM((2,), jnp.float32)],
        ),
        compiler_params=pltpu.CompilerParams(
            dimension_semantics=("arbitrary",),      # serial accumulator over tiles
            vmem_limit_bytes=32 * 1024 * 1024,       # >= v5e's 16 MiB scoped default,
                                                     # safe on v7x's 64 MiB physical
        ),
        cost_estimate=cost,
    )(logits, target2d)                              # no wrapper-side f32 cast
    return out[0, 0]


def _reference(logits, target, alpha=1.0, gamma=2.0, xent=0.1):
    C = logits.shape[-1]
    onehot = jax.nn.one_hot(target, C, dtype=jnp.float32)
    ln = logits / jnp.maximum(jnp.linalg.norm(logits, axis=-1, keepdims=True), 1e-12)
    cos = jnp.sum(ln * onehot, axis=-1) / jnp.maximum(
        jnp.linalg.norm(ln, axis=-1) * jnp.linalg.norm(onehot, axis=-1), 1e-8)
    cosine_loss = jnp.mean(1.0 - cos)
    logp = jax.nn.log_softmax(logits, axis=-1)
    ce = -jnp.take_along_axis(logp, target[:, None], axis=-1)[:, 0]
    pt = jnp.exp(-ce)
    focal = jnp.mean(alpha * (1.0 - pt) ** gamma * ce)
    return cosine_loss + xent * focal


if __name__ == "__main__":
    key = jax.random.PRNGKey(0)
    k1, k2 = jax.random.split(key)
    B, C = 8, 32
    logits = jax.random.normal(k1, (B, C), dtype=jnp.float32)
    target = jax.random.randint(k2, (B,), 0, C, dtype=jnp.int32)

    out = focal_cosine_loss(logits, target)
    jax.block_until_ready(out)

    ref = _reference(logits, target)
    assert jnp.allclose(out, ref, rtol=1e-5, atol=1e-5), (out, ref)

    # exercise the batch-tiled / masked-last-tile path too (B not multiple of TB)
    B2 = 20
    k3, k4 = jax.random.split(k1)
    logits2 = jax.random.normal(k3, (B2, C), dtype=jnp.float32)
    target2 = jax.random.randint(k4, (B2,), 0, C, dtype=jnp.int32)
    out2 = focal_cosine_loss(logits2, target2, block_rows=8)
    jax.block_until_ready(out2)
    ref2 = _reference(logits2, target2)
    assert jnp.allclose(out2, ref2, rtol=1e-5, atol=1e-5), (out2, ref2)

    print("KERNEL_OK")
</pallas_src>

<mosaic_0001>
module attributes {stable_mosaic.version = 11 : i64} {
  func.func @_focal_cosine_kernel(%arg0: i32, %arg1: memref<8x32xf32, #tpu.memory_space<vmem>>, %arg2: memref<8x1xi32, #tpu.memory_space<vmem>>, %arg3: memref<1x1xf32, #tpu.memory_space<smem>>, %arg4: memref<2xf32, #tpu.memory_space<smem>>) attributes {dimension_semantics = [#tpu.dimension_semantics<arbitrary>], iteration_bounds = array<i64: 1>, scalar_prefetch = 0 : i64, scratch_operands = 1 : i64, tpu.core_type = #tpu.core_type<tc>, window_params = [{transform_indices = @transform_0, window_bounds = array<i64: 8, 32>}, {transform_indices = @transform_1, window_bounds = array<i64: 8, 1>}, {transform_indices = @transform_2, window_bounds = array<i64: 1, 1>}]} {
    %c0_i32 = arith.constant 0 : i32
    %0 = arith.cmpi eq, %arg0, %c0_i32 : i32
    %1 = arith.extui %0 : i1 to i32
    %c0_i32_0 = arith.constant 0 : i32
    %2 = arith.cmpi ne, %1, %c0_i32_0 : i32
    scf.if %2 {
      %cst_18 = arith.constant 0.000000e+00 : f32
      %c0_19 = arith.constant 0 : index
      %56 = memref.load %arg4[%c0_19] : memref<2xf32, #tpu.memory_space<smem>>
      memref.store %cst_18, %arg4[%c0_19] : memref<2xf32, #tpu.memory_space<smem>>
      %cst_20 = arith.constant 0.000000e+00 : f32
      %c1_21 = arith.constant 1 : index
      %57 = memref.load %arg4[%c1_21] : memref<2xf32, #tpu.memory_space<smem>>
      memref.store %cst_20, %arg4[%c1_21] : memref<2xf32, #tpu.memory_space<smem>>
    } else {
    }
    %c0 = arith.constant 0 : index
    %c0_1 = arith.constant 0 : index
    %3 = vector.load %arg1[%c0, %c0_1] : memref<8x32xf32, #tpu.memory_space<vmem>>, vector<8x32xf32>
    %c0_2 = arith.constant 0 : index
    %c0_3 = arith.constant 0 : index
    %4 = vector.load %arg2[%c0_2, %c0_3] : memref<8x1xi32, #tpu.memory_space<vmem>>, vector<8x1xi32>
    %5 = tpu.iota {dimensions = array<i32: 1>} : vector<8x32xi32>
    %6 = vector.broadcast %4 : vector<8x1xi32> to vector<8x32xi32>
    %7 = arith.cmpi eq, %5, %6 : vector<8x32xi32>
    %8 = arith.extui %7 : vector<8x32xi1> to vector<8x32xi32>
    %9 = arith.sitofp %8 : vector<8x32xi32> to vector<8x32xf32>
    %10 = arith.mulf %3, %9 : vector<8x32xf32>
    %cst = arith.constant dense<0.000000e+00> : vector<8xf32>
    %11 = vector.multi_reduction <add>, %10, %cst [1] : vector<8x32xf32> to vector<8xf32>
    %12 = vector.shape_cast %11 : vector<8xf32> to vector<8x1xf32>
    %13 = arith.mulf %3, %3 : vector<8x32xf32>
    %cst_4 = arith.constant dense<0.000000e+00> : vector<8xf32>
    %14 = vector.multi_reduction <add>, %13, %cst_4 [1] : vector<8x32xf32> to vector<8xf32>
    %15 = vector.shape_cast %14 : vector<8xf32> to vector<8x1xf32>
    %cst_5 = arith.constant 1.000000e-24 : f32
    %16 = vector.broadcast %cst_5 : f32 to vector<8x1xf32>
    %17 = arith.maximumf %15, %16 : vector<8x1xf32>
    %18 = math.rsqrt %17 : vector<8x1xf32>
    %19 = arith.mulf %12, %18 : vector<8x1xf32>
    %cst_6 = arith.constant 1.000000e+00 : f32
    %20 = vector.broadcast %cst_6 : f32 to vector<8x1xf32>
    %21 = arith.subf %20, %19 : vector<8x1xf32>
    %cst_7 = arith.constant dense<0xFF800000> : vector<8xf32>
    %22 = vector.multi_reduction <maximumf>, %3, %cst_7 [1] : vector<8x32xf32> to vector<8xf32>
    %23 = vector.shape_cast %22 : vector<8xf32> to vector<8x1xf32>
    %24 = vector.broadcast %23 : vector<8x1xf32> to vector<8x32xf32>
    %25 = arith.subf %3, %24 : vector<8x32xf32>
    %26 = math.exp %25 : vector<8x32xf32>
    %cst_8 = arith.constant dense<0.000000e+00> : vector<8xf32>
    %27 = vector.multi_reduction <add>, %26, %cst_8 [1] : vector<8x32xf32> to vector<8xf32>
    %28 = vector.shape_cast %27 : vector<8xf32> to vector<8x1xf32>
    %29 = math.log %28 : vector<8x1xf32>
    %30 = arith.subf %12, %23 : vector<8x1xf32>
    %31 = arith.subf %30, %29 : vector<8x1xf32>
    %cst_9 = arith.constant 0.000000e+00 : f32
    %32 = vector.broadcast %cst_9 : f32 to vector<8x1xf32>
    %33 = arith.subf %32, %31 : vector<8x1xf32>
    %34 = math.exp %31 : vector<8x1xf32>
    %cst_10 = arith.constant 1.000000e+00 : f32
    %35 = vector.broadcast %cst_10 : f32 to vector<8x1xf32>
    %36 = arith.subf %35, %34 : vector<8x1xf32>
    %37 = arith.mulf %36, %36 : vector<8x1xf32>
    %38 = arith.mulf %37, %33 : vector<8x1xf32>
    %c0_11 = arith.constant 0 : index
    %39 = memref.load %arg4[%c0_11] : memref<2xf32, #tpu.memory_space<smem>>
    %40 = vector.shape_cast %21 : vector<8x1xf32> to vector<1x8x1xf32>
    %cst_12 = arith.constant dense<0.000000e+00> : vector<1xf32>
    %41 = vector.multi_reduction <add>, %40, %cst_12 [1, 2] : vector<1x8x1xf32> to vector<1xf32>
    %42 = vector.shape_cast %41 : vector<1xf32> to vector<1x1x1xf32>
    %43 = vector.extract %42[0, 0, 0] : f32 from vector<1x1x1xf32>
    %44 = arith.addf %39, %43 : f32
    %c0_13 = arith.constant 0 : index
    %45 = memref.load %arg4[%c0_13] : memref<2xf32, #tpu.memory_space<smem>>
    memref.store %44, %arg4[%c0_13] : memref<2xf32, #tpu.memory_space<smem>>
    %c1 = arith.constant 1 : index
    %46 = memref.load %arg4[%c1] : memref<2xf32, #tpu.memory_space<smem>>
    %47 = vector.shape_cast %38 : vector<8x1xf32> to vector<1x8x1xf32>
    %cst_14 = arith.constant dense<0.000000e+00> : vector<1xf32>
    %48 = vector.multi_reduction <add>, %47, %cst_14 [1, 2] : vector<1x8x1xf32> to vector<1xf32>
    %49 = vector.shape_cast %48 : vector<1xf32> to vector<1x1x1xf32>
    %50 = vector.extract %49[0, 0, 0] : f32 from vector<1x1x1xf32>
    %51 = arith.addf %46, %50 : f32
    %c1_15 = arith.constant 1 : index
    %52 = memref.load %arg4[%c1_15] : memref<2xf32, #tpu.memory_space<smem>>
    memref.store %51, %arg4[%c1_15] : memref<2xf32, #tpu.memory_space<smem>>
    %c0_i32_16 = arith.constant 0 : i32
    %53 = arith.cmpi eq, %arg0, %c0_i32_16 : i32
    %54 = arith.extui %53 : i1 to i32
    %c0_i32_17 = arith.constant 0 : i32
    %55 = arith.cmpi ne, %54, %c0_i32_17 : i32
    scf.if %55 {
      %c0_18 = arith.constant 0 : index
      %56 = memref.load %arg4[%c0_18] : memref<2xf32, #tpu.memory_space<smem>>
      %c1_19 = arith.constant 1 : index
      %57 = memref.load %arg4[%c1_19] : memref<2xf32, #tpu.memory_space<smem>>
      %cst_20 = arith.constant 1.000000e-01 : f32
      %58 = arith.mulf %cst_20, %57 : f32
      %59 = arith.addf %56, %58 : f32
      %cst_21 = arith.constant 1.250000e-01 : f32
      %60 = arith.mulf %59, %cst_21 : f32
      %c0_22 = arith.constant 0 : index
      %c0_23 = arith.constant 0 : index
      %61 = memref.load %arg3[%c0_22, %c0_23] : memref<1x1xf32, #tpu.memory_space<smem>>
      memref.store %60, %arg3[%c0_22, %c0_23] : memref<1x1xf32, #tpu.memory_space<smem>>
    } else {
    }
    return
  }
  func.func @transform_0(%arg0: i32) -> (i32, i32) {
    %c0_i32 = arith.constant 0 : i32
    %c0_i32_0 = arith.constant 0 : i32
    return %arg0, %c0_i32 : i32, i32
  }
  func.func @transform_1(%arg0: i32) -> (i32, i32) {
    %c0_i32 = arith.constant 0 : i32
    %c0_i32_0 = arith.constant 0 : i32
    return %arg0, %c0_i32 : i32, i32
  }
  func.func @transform_2(%arg0: i32) -> (i32, i32) {
    %c0_i32 = arith.constant 0 : i32
    %c0_i32_0 = arith.constant 0 : i32
    %c0_i32_1 = arith.constant 0 : i32
    return %c0_i32, %c0_i32_0 : i32, i32
  }
}

</mosaic_0001>

<llo_original>
// kernel: tpu_custom_call.1
$region0: #{tpu_custom_call.1}
  #allocation0 [shape = 'u32[]', space=smem, size = 0x4, offset = 0x4, fixed_abs, tag = 'smem constant byte address 0x4 - core index']
  #allocation1 [shape = 'u32[144,128]{1,0:T(1,128)}', space=vmem, size = 0x12000, scoped, tag = 'internal scratch']
  #allocation2 [shape = 'f32[2]{0:T(128)}', space=smem, size = 0x200, scoped, tag = 'scratch operand']
  %s0 = inlined_call_operand.vmem [shape: f32[8,32], index: 0, kind: input, shape index: {}]
  %s1 = inlined_call_operand.vmem [shape: s32[8,1], index: 1, kind: input, shape index: {}]
  %s2 = inlined_call_operand.hbm [shape: f32[1,1], index: 2, kind: output, shape index: {}]
  %s3 = sld [smem:[#allocation0]]
  $region26: #{tpu_custom_call.1} parent=0
    _
  %s5 = ssub.s32 1, %s3
  %s6 = scalar_select 0, %s5, %s3
  $region1: #{tpu_custom_call.1} parent=0
    #allocation3 [shape = 'u8[512]{0}', space=smem, size = 0x200, scoped, tag = 'output window, operand 0, single buffered']
    #allocation4 [shape = 's32[1]{0}', space=sflag, size = 0x4, scoped, tag = 'scoped memory for tpu_custom_call.1']
    %7 = vsyncpa [#allocation4], 0
    // Predicated region
    $region2: #{tpu_custom_call.1} parent=1 // pred_check
      _
    $region3: #{tpu_custom_call.1} parent=1 // pred_check_branch
      %9 = sbr.rel (0) target = $region5
    $region4: #{tpu_custom_call.1} parent=1 // pred_region
      _
    $region5: #{tpu_custom_call.1} parent=1 // pred_fallthru
      _
    // Predicated region
    $region6: #{tpu_custom_call.1} parent=1 // pred_check
      _
    $region7: #{tpu_custom_call.1} parent=1 // pred_check_branch
      %11 = sbr.rel (0) target = $region9
    $region8: #{tpu_custom_call.1} parent=1 // pred_region
      _
    $region9: #{tpu_custom_call.1} parent=1 // pred_fallthru
      _
    %p12 = scmp.eq.s32.totalorder 0, 0
    // Predicated region
    $region10: #{tpu_custom_call.1} parent=1 // pred_check
      %p13 = pneg %p12
    $region11: #{tpu_custom_call.1} parent=1 // pred_check_branch
      %15 = sbr.rel (%p13) target = $region13
    $region12: #{tpu_custom_call.1} parent=1 // pred_region
      %s16 = scalar_lea.smem [#allocation2], 0
      %17 = sst [smem:[%s16]] 0.0
      %s18 = scalar_lea.smem [#allocation2], 1
      %19 = sst [smem:[%s18]] 0.0
    $region13: #{tpu_custom_call.1} parent=1 // pred_fallthru
      _
    %v20 = vld [vmem:[%s0] sm:$0xff]
    %v21 = vld [vmem:[%s1] sm:$0xff]
    %v22 = vlaneseq
    %v23 = vand.u32 %v22, 127
    %24 = vset.pattern.permute.xlu0 0
    %25 = vperm.xlu0 %24, %v21
    %v26 = vpop.permute.xlu0 %25
    %vm27 = vcmp.eq.s32.totalorder %v23, %v26
    %v28 = vsel %vm27, 1, 0
    %v29 = vcvt.s32.f32 %v28
    %v30 = vmul.f32 %v20, %v29
    %vm31 = vcmask 261120
    %v32 = vsel %vm31, %v30, 0.0
    %33 = vadd.xlane.f32.xlu0 %v32
    %v34 = vpop.xlane.xlu0 %33
    %v35 = vmul.f32 %v20, %v20
    %v36 = vsel %vm31, %v35, 0.0
    %37 = vadd.xlane.f32.xlu0 %v36
    %v38 = vpop.xlane.xlu0 %37
    %v39 = vmax.f32 %v38, 1e-24
    %v40 = vrsqrt.pop %v39
    %v41 = vmul.f32 %v34, %v40
    %v42 = vsub.f32 1.0, %v41
    %v43 = vsel %vm31, %v20, -inf
    %44 = vmax.xlane.f32.xlu0 %v43
    %v45 = vpop.xlane.xlu0 %44
    %v46 = vsub.f32 %v20, %v45
    %v47 = vmul.f32 %v46, 1.442695
    %v48 = vpow.pop %v47
    %v49 = vsel %vm31, %v48, 0.0
    %50 = vadd.xlane.f32.xlu0 %v49
    %v51 = vpop.xlane.xlu0 %50
    %v52 = vlog2.pop %v51
    %v53 = vmul.f32 %v52, 0.6931472
    %v54 = vsub.f32 %v34, %v45
    %v55 = vsub.f32 %v54, %v53
    %v56 = vsub.f32 0.0, %v55
    %v57 = vmul.f32 %v55, 1.442695
    %v58 = vpow.pop %v57
    %v59 = vsub.f32 1.0, %v58
    %v60 = vmul.f32 %v59, %v59
    %v61 = vmul.f32 %v60, %v56
    %s62 = sld [smem:[#allocation2]]
    %vm63 = vcmask 7168
    %v64 = vsel %vm63, %v42, 0.0
    %65 = vadd.xlane.f32.xlu0 %v64
    %v66 = vpop.xlane.xlu0 %65
    %v67 = vrot.slane %v66, 4
    %v68 = vadd.f32 %v66, %v67
    %v69 = vrot.slane %v68, 2
    %v70 = vadd.f32 %v68, %v69
    %v71 = vrot.slane %v70, 1
    %v72 = vadd.f32 %v70, %v71
    %s73 = vtos %v72
    %s74 = sadd.f32 %s62, %s73
    %s75 = scalar_lea.smem [#allocation2], 0
    %76 = sst [smem:[%s75]] %s74
    %s77 = sld [smem:[#allocation2 + $0x1]]
    %v78 = vsel %vm63, %v61, 0.0
    %79 = vadd.xlane.f32.xlu0 %v78
    %v80 = vpop.xlane.xlu0 %79
    %v81 = vrot.slane %v80, 4
    %v82 = vadd.f32 %v80, %v81
    %v83 = vrot.slane %v82, 2
    %v84 = vadd.f32 %v82, %v83
    %v85 = vrot.slane %v84, 1
    %v86 = vadd.f32 %v84, %v85
    %s87 = vtos %v86
    %s88 = sadd.f32 %s77, %s87
    %s89 = scalar_lea.smem [#allocation2], 1
    %90 = sst [smem:[%s89]] %s88
    // Predicated region
    $region14: #{tpu_custom_call.1} parent=1 // pred_check
      %p91 = pneg %p12
    $region15: #{tpu_custom_call.1} parent=1 // pred_check_branch
      %93 = sbr.rel (%p91) target = $region17
    $region16: #{tpu_custom_call.1} parent=1 // pred_region
      %s94 = sld [smem:[#allocation2]]
      %s95 = sld [smem:[#allocation2 + $0x1]]
      %s96 = smul.f32 %s95, 0.1
      %s97 = sadd.f32 %s94, %s96
      %s98 = smul.f32 %s97, 0.125
      %s99 = scalar_lea.smem [#allocation3], 0
      %100 = sst [smem:[%s99]] %s98
    $region17: #{tpu_custom_call.1} parent=1 // pred_fallthru
      _
    // Predicated region
    $region18: #{tpu_custom_call.1} parent=1 // pred_check
      _
    $region19: #{tpu_custom_call.1} parent=1 // pred_check_branch
      %102 = sbr.rel (0) target = $region21
    $region20: #{tpu_custom_call.1} parent=1 // pred_region
      %s104 = ssub.s32 16, 16
      %105 = vsyncadd [#allocation4], %s104
      %108 = dma.smem_to_hbm [#allocation3], 16, %s2, [#allocation4]
    $region21: #{tpu_custom_call.1} parent=1 // pred_fallthru
      _
    // Predicated region
    $region22: #{tpu_custom_call.1} parent=1 // pred_check
      _
    $region23: #{tpu_custom_call.1} parent=1 // pred_check_branch
      %110 = sbr.rel (0) target = $region25
    $region24: #{tpu_custom_call.1} parent=1 // pred_region
      %111 = dma.done [#allocation4], 16
    $region25: #{tpu_custom_call.1} parent=1 // pred_fallthru
      _
    %112 = sfence
    %113 = vsyncpa [#allocation4], 1

</llo_original>
